<compile_context>
chip_gen: v5e
topology: v5e:2x2
jax: 0.10.0
libtpu: 0.0.40
codegen_flags: <defaults>
</compile_context>

<pallas_src>
import jax
import jax.numpy as jnp
from jax import lax
from jax.experimental import pallas as pl
from jax.experimental.pallas import tpu as pltpu

V_JOINTS = 25                         # hard-coded 25 joints, as in the PyTorch module

_TARGET_BUFFER_BYTES = 2 * 1024 * 1024   # ~2 MiB per pipeline buffer (sweet spot per tile sweeps)
_VMEM_LIMIT_BYTES = 32 * 1024 * 1024     # explicit; > v5e default (16 MiB), << v7x physical (64 MiB)


def _round_up(x, m):
    return ((x + m - 1) // m) * m


def _pick_batch_blocks(batch, row_vmem_bytes):
    """Rows per batch tile (multiple of 16) and number of grid blocks.

    row_vmem_bytes is the *padded* VMEM footprint of one batch row.  The tile is sized so
    2 inputs x 2 pipeline buffers stay around 4 * _TARGET_BUFFER_BYTES, and we prefer an
    even number of >= 2 blocks so the "parallel" grid axis can use both v7x TensorCores.
    """
    rows = max(16, ((_TARGET_BUFFER_BYTES // max(row_vmem_bytes, 1)) // 16) * 16)
    num_blocks = pl.cdiv(batch, rows)
    if batch > 16:
        num_blocks = max(num_blocks, 2)       # give both TensorCores work (v7x megacore)
        num_blocks += num_blocks % 2          # even split across the two TCs
    block_b = max(16, _round_up(pl.cdiv(batch, num_blocks), 16))
    num_blocks = pl.cdiv(batch, block_b)      # drop blocks made empty by the rounding
    return block_b, num_blocks


def _lane_dense_partials(xr, yr, vm):
    """Primary path.  xr, yr: (B, L=T*V*M) views (no copy).

    Returns a (2, L) f32 array:
      row 0: sum_b |x[b, l] - x[b, l - vm]|        (per flattened (t, v, m) slot)
      row 1: sum_b ((dx - dy)^2)[b, l]
    Slots with t == 0 (lanes l < vm) hold roll wraparound and are dropped by the caller.
    """
    batch, lanes = xr.shape
    itemsize = jnp.dtype(xr.dtype).itemsize
    lanes_pad = _round_up(lanes, 128)                       # lane-aligned block (may overhang)
    block_b, num_blocks = _pick_batch_blocks(batch, lanes_pad * itemsize)
    masked_rows = (num_blocks * block_b != batch)           # last block overhangs B

    def kernel(x_ref, y_ref, out_ref):
        x = x_ref[...].astype(jnp.float32)                  # (block_b, lanes_pad)
        y = y_ref[...].astype(jnp.float32)
        # Lane l of the roll holds element l - vm == (t-1, v, m), the temporal
        # predecessor of lane l == (t, v, m).  Lanes l < vm (t == 0) and the padded
        # lanes [lanes, lanes_pad) are wraparound/garbage; the wrapper never reads them.
        mx = x - pltpu.roll(x, shift=vm, axis=1)
        my = y - pltpu.roll(y, shift=vm, axis=1)
        d = mx - my
        abs_mx = jnp.abs(mx)
        sq = d * d
        if masked_rows:
            # Zero the overhanging (garbage) batch rows before they mix into the sums.
            row = lax.broadcasted_iota(jnp.int32, (block_b, 1), 0)
            valid = row + pl.program_id(0) * block_b < batch
            abs_mx = jnp.where(valid, abs_mx, 0.0)
            sq = jnp.where(valid, sq, 0.0)
        out_ref[0] = jnp.concatenate(
            [jnp.sum(abs_mx, axis=0, keepdims=True),
             jnp.sum(sq, axis=0, keepdims=True)], axis=0)   # (2, lanes_pad), dense store

    cost = pl.CostEstimate(
        flops=8 * batch * lanes,
        transcendentals=0,
        bytes_accessed=2 * batch * lanes * itemsize + num_blocks * 2 * lanes_pad * 4,
    )
    partials = pl.pallas_call(
        kernel,
        out_shape=jax.ShapeDtypeStruct((num_blocks, 2, lanes_pad), jnp.float32),
        grid_spec=pltpu.PrefetchScalarGridSpec(
            num_scalar_prefetch=0,
            grid=(num_blocks,),
            in_specs=[
                pl.BlockSpec((block_b, lanes_pad), lambda i: (i, 0)),
                pl.BlockSpec((block_b, lanes_pad), lambda i: (i, 0)),
            ],
            out_specs=pl.BlockSpec((1, 2, lanes_pad), lambda i: (i, 0, 0)),
        ),
        compiler_params=pltpu.CompilerParams(
            dimension_semantics=("parallel",),
            vmem_limit_bytes=_VMEM_LIMIT_BYTES,
        ),
        cost_estimate=cost,
    )(xr, yr)
    return jnp.sum(partials, axis=0)[:, :lanes]             # (2, T*V*M)


def _sublane_partials(xr, yr):
    """Fallback path on the natural (B, T, V*M) view (temporal diff via sublane roll)."""
    batch, t, vm = xr.shape
    itemsize = jnp.dtype(xr.dtype).itemsize
    sub = 16 if itemsize == 2 else 8
    row_bytes = _round_up(t, sub) * 128 * itemsize           # padded VMEM bytes per batch row
    block_b, num_blocks = _pick_batch_blocks(batch, row_bytes)
    masked_rows = (num_blocks * block_b != batch)

    def kernel(x_ref, y_ref, out_ref):
        x = x_ref[...].astype(jnp.float32)                   # (block_b, t, vm)
        y = y_ref[...].astype(jnp.float32)
        mx = x - pltpu.roll(x, shift=1, axis=1)              # row t-1; row 0 wraps (dropped later)
        my = y - pltpu.roll(y, shift=1, axis=1)
        d = mx - my
        abs_mx = jnp.abs(mx)
        sq = d * d
        if masked_rows:
            row = lax.broadcasted_iota(jnp.int32, (block_b, 1, 1), 0)
            valid = row + pl.program_id(0) * block_b < batch
            abs_mx = jnp.where(valid, abs_mx, 0.0)
            sq = jnp.where(valid, sq, 0.0)
        out_ref[0] = jnp.stack(
            [jnp.sum(abs_mx, axis=0), jnp.sum(sq, axis=0)], axis=0)   # (2, t, vm)

    partials = pl.pallas_call(
        kernel,
        out_shape=jax.ShapeDtypeStruct((num_blocks, 2, t, vm), jnp.float32),
        grid_spec=pltpu.PrefetchScalarGridSpec(
            num_scalar_prefetch=0,
            grid=(num_blocks,),
            in_specs=[
                pl.BlockSpec((block_b, t, vm), lambda i: (i, 0, 0)),
                pl.BlockSpec((block_b, t, vm), lambda i: (i, 0, 0)),
            ],
            out_specs=pl.BlockSpec((1, 2, t, vm), lambda i: (i, 0, 0, 0)),
        ),
        compiler_params=pltpu.CompilerParams(
            dimension_semantics=("parallel",),
            vmem_limit_bytes=_VMEM_LIMIT_BYTES,
        ),
    )(xr, yr)
    return jnp.sum(partials, axis=0).reshape(2, t * vm)


def _finalize(stats, batch, t, v, m):
    """Tiny O(V) finalize in plain JAX.  stats: (2, T*V*M) per-slot sums."""
    stats = stats.reshape(2, t, v, m)
    abs_per_joint = jnp.sum(stats[0, 1:], axis=(0, 2))       # (V,)  drop wraparound frame 0
    sq_per_joint = jnp.sum(stats[1, 1:], axis=(0, 2))
    count = jnp.float32(batch * (t - 1) * m)                  # true per-joint element count
    mean_move = abs_per_joint / count
    norm = jnp.sqrt(jnp.sum(mean_move * mean_move))
    # sklearn.preprocessing.normalize leaves an all-zero row as zero (no NaN).
    ratio = jnp.float32(v) * mean_move / jnp.where(norm > 0.0, norm, 1.0)
    return jnp.sum(ratio * sq_per_joint) / (count * jnp.float32(v))


def _motion_loss_impl(x, y, lane_dense):
    n, c, t, v, m = x.shape
    batch = n * c
    vm = v * m
    if lane_dense:
        stats = _lane_dense_partials(x.reshape(batch, t * vm), y.reshape(batch, t * vm), vm)
    else:
        stats = _sublane_partials(x.reshape(batch, t, vm), y.reshape(batch, t, vm))
    return _finalize(stats, batch, t, v, m)


def motion_loss(x, y):
    """x, y: (N, C, T, V, M) arrays with V == 25 (f32 or bf16). Returns the scalar loss."""
    n, c, t, v, m = x.shape
    assert x.shape == y.shape
    assert v == V_JOINTS, "MotionLoss hard-codes 25 joints"
    assert t >= 2, "need at least two frames for a temporal difference"
    try:
        return _motion_loss_impl(x, y, lane_dense=True)
    except Exception:
        # Conservative fallback: identical math on the natural (B, T, V*M) tiles, in case
        # the multi-vreg lane rotation of the flattened layout is not supported by the
        # installed Mosaic version.
        return _motion_loss_impl(x, y, lane_dense=False)


def motion_loss_ref(x, y):
    """Pure-JAX reference mirroring the PyTorch forward (incl. sklearn's zero-row rule)."""
    mx = x[:, :, 1:] - x[:, :, :-1]
    my = y[:, :, 1:] - y[:, :, :-1]
    mean_move = jnp.mean(jnp.abs(mx), axis=(0, 1, 2, 4))                  # (V,)
    norm = jnp.sqrt(jnp.sum(mean_move ** 2))
    ratio = 25.0 * mean_move / jnp.where(norm > 0.0, norm, 1.0)
    return jnp.mean((mx - my) ** 2 * ratio[None, None, None, :, None])


if __name__ == "__main__":
    key = jax.random.PRNGKey(0)
    kx, ky = jax.random.split(key)

    # Small but representative: B = N*C = 18 -> two parallel grid blocks with row masking,
    # and T*V*M = 400 -> lane-padded (512) block on the flattened axis.
    N, C, T, V, M = 6, 3, 8, 25, 2
    x = jax.random.normal(kx, (N, C, T, V, M), dtype=jnp.float32)
    y = jax.random.normal(ky, (N, C, T, V, M), dtype=jnp.float32)

    loss = jax.block_until_ready(motion_loss(x, y))
    ref = jax.block_until_ready(motion_loss_ref(x, y))

    assert jnp.isfinite(loss), "non-finite loss"
    assert jnp.allclose(loss, ref, rtol=1e-4, atol=1e-6), (loss, ref)
    print("KERNEL_OK")
</pallas_src>

<mosaic_0001>
module attributes {stable_mosaic.version = 11 : i64} {
  func.func @kernel(%arg0: i32, %arg1: memref<16x512xf32, #tpu.memory_space<vmem>>, %arg2: memref<16x512xf32, #tpu.memory_space<vmem>>, %arg3: memref<1x2x512xf32, #tpu.memory_space<vmem>>) attributes {dimension_semantics = [#tpu.dimension_semantics<parallel>], iteration_bounds = array<i64: 2>, scalar_prefetch = 0 : i64, scratch_operands = 0 : i64, tpu.core_type = #tpu.core_type<tc>, window_params = [{transform_indices = @transform_0, window_bounds = array<i64: 16, 512>}, {transform_indices = @transform_1, window_bounds = array<i64: 16, 512>}, {transform_indices = @transform_2, window_bounds = array<i64: 1, 2, 512>}]} {
    %c0 = arith.constant 0 : index
    %c0_0 = arith.constant 0 : index
    %0 = vector.load %arg1[%c0, %c0_0] : memref<16x512xf32, #tpu.memory_space<vmem>>, vector<16x512xf32>
    %c0_1 = arith.constant 0 : index
    %c0_2 = arith.constant 0 : index
    %1 = vector.load %arg2[%c0_1, %c0_2] : memref<16x512xf32, #tpu.memory_space<vmem>>, vector<16x512xf32>
    %c50_i32 = arith.constant 50 : i32
    %2 = tpu.dynamic_rotate %0 by %c50_i32 dim 1 : vector<16x512xf32>, i32 -> vector<16x512xf32>
    %3 = arith.subf %0, %2 : vector<16x512xf32>
    %c50_i32_3 = arith.constant 50 : i32
    %4 = tpu.dynamic_rotate %1 by %c50_i32_3 dim 1 : vector<16x512xf32>, i32 -> vector<16x512xf32>
    %5 = arith.subf %1, %4 : vector<16x512xf32>
    %6 = arith.subf %3, %5 : vector<16x512xf32>
    %7 = math.absf %3 : vector<16x512xf32>
    %8 = arith.mulf %6, %6 : vector<16x512xf32>
    %9 = tpu.iota {dimensions = array<i32: 0>} : vector<16x1xi32>
    %c16_i32 = arith.constant 16 : i32
    %10 = arith.muli %arg0, %c16_i32 : i32
    %11 = vector.broadcast %10 : i32 to vector<16x1xi32>
    %12 = arith.addi %9, %11 : vector<16x1xi32>
    %c18_i32 = arith.constant 18 : i32
    %13 = vector.broadcast %c18_i32 : i32 to vector<16x1xi32>
    %14 = arith.cmpi slt, %12, %13 : vector<16x1xi32>
    %cst = arith.constant 0.000000e+00 : f32
    %15 = vector.shape_cast %14 : vector<16x1xi1> to vector<16x1xi1>
    %16 = vector.broadcast %15 : vector<16x1xi1> to vector<16x512xi1>
    %17 = vector.broadcast %cst : f32 to vector<16x512xf32>
    %18 = arith.select %16, %7, %17 : vector<16x512xi1>, vector<16x512xf32>
    %cst_4 = arith.constant 0.000000e+00 : f32
    %19 = vector.shape_cast %14 : vector<16x1xi1> to vector<16x1xi1>
    %20 = vector.broadcast %19 : vector<16x1xi1> to vector<16x512xi1>
    %21 = vector.broadcast %cst_4 : f32 to vector<16x512xf32>
    %22 = arith.select %20, %8, %21 : vector<16x512xi1>, vector<16x512xf32>
    %cst_5 = arith.constant dense<0.000000e+00> : vector<512xf32>
    %23 = vector.multi_reduction <add>, %18, %cst_5 [0] : vector<16x512xf32> to vector<512xf32>
    %24 = vector.shape_cast %23 : vector<512xf32> to vector<1x512xf32>
    %cst_6 = arith.constant dense<0.000000e+00> : vector<512xf32>
    %25 = vector.multi_reduction <add>, %22, %cst_6 [0] : vector<16x512xf32> to vector<512xf32>
    %26 = vector.shape_cast %25 : vector<512xf32> to vector<1x512xf32>
    %27 = tpu.concatenate %24, %26 in 0 : vector<1x512xf32>, vector<1x512xf32> -> vector<2x512xf32>
    %c0_7 = arith.constant 0 : index
    %c0_8 = arith.constant 0 : index
    %c0_9 = arith.constant 0 : index
    %28 = vector.load %arg3[%c0_7, %c0_8, %c0_9] : memref<1x2x512xf32, #tpu.memory_space<vmem>>, vector<1x2x512xf32>
    %29 = vector.shape_cast %28 : vector<1x2x512xf32> to vector<2x512xf32>
    %30 = vector.shape_cast %27 : vector<2x512xf32> to vector<1x2x512xf32>
    tpu.vector_store %arg3[%c0_7, %c0_8, %c0_9], %30 {strides = array<i32>} : memref<1x2x512xf32, #tpu.memory_space<vmem>>, vector<1x2x512xf32>,
    return
  }
  func.func @transform_0(%arg0: i32) -> (i32, i32) {
    %c0_i32 = arith.constant 0 : i32
    %c0_i32_0 = arith.constant 0 : i32
    return %arg0, %c0_i32 : i32, i32
  }
  func.func @transform_1(%arg0: i32) -> (i32, i32) {
    %c0_i32 = arith.constant 0 : i32
    %c0_i32_0 = arith.constant 0 : i32
    return %arg0, %c0_i32 : i32, i32
  }
  func.func @transform_2(%arg0: i32) -> (i32, i32, i32) {
    %c0_i32 = arith.constant 0 : i32
    %c0_i32_0 = arith.constant 0 : i32
    %c0_i32_1 = arith.constant 0 : i32
    return %arg0, %c0_i32, %c0_i32_0 : i32, i32, i32
  }
}

module attributes {stable_mosaic.version = 11 : i64} {
  func.func @kernel(%arg0: i32, %arg1: memref<16x8x50xf32, #tpu.memory_space<vmem>>, %arg2: memref<16x8x50xf32, #tpu.memory_space<vmem>>, %arg3: memref<1x2x8x50xf32, #tpu.memory_space<vmem>>) attributes {dimension_semantics = [#tpu.dimension_semantics<parallel>], iteration_bounds = array<i64: 2>, scalar_prefetch = 0 : i64, scratch_operands = 0 : i64, tpu.core_type = #tpu.core_type<tc>, window_params = [{transform_indices = @transform_0, window_bounds = array<i64: 16, 8, 50>}, {transform_indices = @transform_1, window_bounds = array<i64: 16, 8, 50>}, {transform_indices = @transform_2, window_bounds = array<i64: 1, 2, 8, 50>}]} {
    %c0 = arith.constant 0 : index
    %c0_0 = arith.constant 0 : index
    %c0_1 = arith.constant 0 : index
    %0 = vector.load %arg1[%c0, %c0_0, %c0_1] : memref<16x8x50xf32, #tpu.memory_space<vmem>>, vector<16x8x50xf32>
    %c0_2 = arith.constant 0 : index
    %c0_3 = arith.constant 0 : index
    %c0_4 = arith.constant 0 : index
    %1 = vector.load %arg2[%c0_2, %c0_3, %c0_4] : memref<16x8x50xf32, #tpu.memory_space<vmem>>, vector<16x8x50xf32>
    %c1_i32 = arith.constant 1 : i32
    %2 = tpu.dynamic_rotate %0 by %c1_i32 dim 1 : vector<16x8x50xf32>, i32 -> vector<16x8x50xf32>
    %3 = arith.subf %0, %2 : vector<16x8x50xf32>
    %c1_i32_5 = arith.constant 1 : i32
    %4 = tpu.dynamic_rotate %1 by %c1_i32_5 dim 1 : vector<16x8x50xf32>, i32 -> vector<16x8x50xf32>
    %5 = arith.subf %1, %4 : vector<16x8x50xf32>
    %6 = arith.subf %3, %5 : vector<16x8x50xf32>
    %7 = math.absf %3 : vector<16x8x50xf32>
    %8 = arith.mulf %6, %6 : vector<16x8x50xf32>
    %9 = tpu.iota {dimensions = array<i32: 0>} : vector<16x1x1xi32>
    %c16_i32 = arith.constant 16 : i32
    %10 = arith.muli %arg0, %c16_i32 : i32
    %11 = vector.broadcast %10 : i32 to vector<16x1x1xi32>
    %12 = arith.addi %9, %11 : vector<16x1x1xi32>
    %c18_i32 = arith.constant 18 : i32
    %13 = vector.broadcast %c18_i32 : i32 to vector<16x1x1xi32>
    %14 = arith.cmpi slt, %12, %13 : vector<16x1x1xi32>
    %cst = arith.constant 0.000000e+00 : f32
    %15 = vector.shape_cast %14 : vector<16x1x1xi1> to vector<16x1x1xi1>
    %16 = vector.broadcast %15 : vector<16x1x1xi1> to vector<16x8x50xi1>
    %17 = vector.broadcast %cst : f32 to vector<16x8x50xf32>
    %18 = arith.select %16, %7, %17 : vector<16x8x50xi1>, vector<16x8x50xf32>
    %cst_6 = arith.constant 0.000000e+00 : f32
    %19 = vector.shape_cast %14 : vector<16x1x1xi1> to vector<16x1x1xi1>
    %20 = vector.broadcast %19 : vector<16x1x1xi1> to vector<16x8x50xi1>
    %21 = vector.broadcast %cst_6 : f32 to vector<16x8x50xf32>
    %22 = arith.select %20, %8, %21 : vector<16x8x50xi1>, vector<16x8x50xf32>
    %cst_7 = arith.constant dense<0.000000e+00> : vector<8x50xf32>
    %23 = vector.multi_reduction <add>, %18, %cst_7 [0] : vector<16x8x50xf32> to vector<8x50xf32>
    %cst_8 = arith.constant dense<0.000000e+00> : vector<8x50xf32>
    %24 = vector.multi_reduction <add>, %22, %cst_8 [0] : vector<16x8x50xf32> to vector<8x50xf32>
    %25 = vector.shape_cast %23 : vector<8x50xf32> to vector<1x8x50xf32>
    %26 = vector.shape_cast %24 : vector<8x50xf32> to vector<1x8x50xf32>
    %27 = tpu.concatenate %25, %26 in 0 : vector<1x8x50xf32>, vector<1x8x50xf32> -> vector<2x8x50xf32>
    %c0_9 = arith.constant 0 : index
    %c0_10 = arith.constant 0 : index
    %c0_11 = arith.constant 0 : index
    %c0_12 = arith.constant 0 : index
    %28 = vector.load %arg3[%c0_9, %c0_10, %c0_11, %c0_12] : memref<1x2x8x50xf32, #tpu.memory_space<vmem>>, vector<1x2x8x50xf32>
    %29 = vector.shape_cast %28 : vector<1x2x8x50xf32> to vector<2x8x50xf32>
    %30 = vector.shape_cast %27 : vector<2x8x50xf32> to vector<1x2x8x50xf32>
    tpu.vector_store %arg3[%c0_9, %c0_10, %c0_11, %c0_12], %30 {strides = array<i32>} : memref<1x2x8x50xf32, #tpu.memory_space<vmem>>, vector<1x2x8x50xf32>,
    return
  }
  func.func @transform_0(%arg0: i32) -> (i32, i32, i32) {
    %c0_i32 = arith.constant 0 : i32
    %c0_i32_0 = arith.constant 0 : i32
    %c0_i32_1 = arith.constant 0 : i32
    return %arg0, %c0_i32, %c0_i32_0 : i32, i32, i32
  }
  func.func @transform_1(%arg0: i32) -> (i32, i32, i32) {
    %c0_i32 = arith.constant 0 : i32
    %c0_i32_0 = arith.constant 0 : i32
    %c0_i32_1 = arith.constant 0 : i32
    return %arg0, %c0_i32, %c0_i32_0 : i32, i32, i32
  }
  func.func @transform_2(%arg0: i32) -> (i32, i32, i32, i32) {
    %c0_i32 = arith.constant 0 : i32
    %c0_i32_0 = arith.constant 0 : i32
    %c0_i32_1 = arith.constant 0 : i32
    %c0_i32_2 = arith.constant 0 : i32
    return %arg0, %c0_i32, %c0_i32_0, %c0_i32_1 : i32, i32, i32, i32
  }
}

</mosaic_0001>

<llo_original>
// kernel: tpu_custom_call.1
$region0: #{tpu_custom_call.1}
  #allocation0 [shape = 'u32[]', space=smem, size = 0x4, offset = 0x4, fixed_abs, tag = 'smem constant byte address 0x4 - core index']
  #allocation1 [shape = 'u32[72,128]{1,0:T(1,128)}', space=vmem, size = 0x9000, scoped, tag = 'internal scratch']
  %s0 = inlined_call_operand.hbm [shape: f32[18,400], index: 0, kind: input, shape index: {}]
  %s1 = inlined_call_operand.hbm [shape: f32[18,400], index: 1, kind: input, shape index: {}]
  %s2 = inlined_call_operand.hbm [shape: f32[2,2,512], index: 2, kind: output, shape index: {}]
  %s3 = sld [smem:[#allocation0]]
  $region49: #{tpu_custom_call.1} parent=0
    _
  %s5 = ssub.s32 1, %s3
  %s6 = scalar_select 0, %s5, %s3
  $region1: #{tpu_custom_call.1} parent=0
    #allocation2 [shape = 'u8[65536]{0}', space=vmem, size = 0x10000, scoped, tag = 'input window, operand 0']
    #allocation3 [shape = 's32[2]{0}', space=sflag, size = 0x8, scoped, tag = 'scoped memory for tpu_custom_call.1']
    #allocation4 [shape = 's32[2]{0}', space=sflag, size = 0x8, scoped, tag = 'scoped memory for tpu_custom_call.1']
    #allocation5 [shape = 'u8[65536]{0}', space=vmem, size = 0x10000, scoped, tag = 'input window, operand 1']
    #allocation6 [shape = 's32[2]{0}', space=sflag, size = 0x8, scoped, tag = 'scoped memory for tpu_custom_call.1']
    #allocation7 [shape = 'u8[8192]{0}', space=vmem, size = 0x2000, scoped, tag = 'output window, operand 0']
    %7 = vsyncpa [#allocation3], 0
    %s8 = scalar_lea.sflag [#allocation3], 1
    %9 = vsyncpa %s8, 0
    %10 = vsyncpa [#allocation6], 0
    %s11 = scalar_lea.sflag [#allocation6], 1
    %12 = vsyncpa %s11, 0
    %13 = vsyncpa [#allocation4], 0
    %s14 = scalar_lea.sflag [#allocation4], 1
    %15 = vsyncpa %s14, 0
    loop: start=0, step=1, limit=4
    $region2: #{tpu_custom_call.1} parent=1 // loop_pre_header
      _
    $region3: #{tpu_custom_call.1} parent=1 // loop_header
      %s17 = sphi 0, %s21
      %p18 = scmp.ge.s32.totalorder %s17, 4
      %s27 = sphi 0, %s29
      %s30 = sphi 0, %s27
      %s31 = sphi 0, %s30
      %s47 = sphi 0, %s31
      %s53 = sphi 0, %s55
      %s56 = sphi 0, %s53
      %s57 = sphi 0, %s56
      %s73 = sphi 0, %s57
      %s79 = sphi 0, %s81
      %s82 = sphi 0, %s79
      %s83 = sphi 0, %s82
      %s99 = sphi 0, %s83
    $region4: #{tpu_custom_call.1} parent=1 // loop_header_branch
      %20 = sbr.rel (%p18) target = $region8
    $region5: #{tpu_custom_call.1} parent=1 // loop_body
      %s22 = ssub.s32 %s17, 1
      %s23 = ssub.s32 %s17, 2
      %s24 = sadd.s32 %s17, 1
      %s25 = ssub.s32 %s17, %s24
      %p26 = scmp.eq.s32.totalorder %s25, 0
      %s28 = sadd.s32 %s27, 1
      %s29 = scalar_select %p26, %s27, %s28
      %p32 = pneg %p26
      %p33 = scmp.eq.s32.totalorder %s17, 1
      %p34 = por %p32, %p33
      %p35 = scmp.ne.s32.totalorder %s27, %s30
      %p36 = scmp.eq.s32.totalorder %s17, 0
      %p37 = por %p35, %p36
      %p38 = scmp.ne.s32.totalorder %s27, %s30
      %p39 = scmp.eq.s32.totalorder %s22, 1
      %p40 = por %p38, %p39
      %p41 = scmp.ne.s32.totalorder %s30, %s31
      %p42 = scmp.eq.s32.totalorder %s22, 0
      %p43 = por %p41, %p42
      %p44 = scmp.ne.s32.totalorder %s30, %s31
      %p45 = scmp.eq.s32.totalorder %s23, 1
      %p46 = por %p44, %p45
      %p48 = scmp.ne.s32.totalorder %s31, %s47
      %p49 = scmp.eq.s32.totalorder %s23, 0
      %p50 = por %p48, %p49
      %s51 = ssub.s32 %s17, %s24
      %p52 = scmp.eq.s32.totalorder %s51, 0
      %s54 = sadd.s32 %s53, 1
      %s55 = scalar_select %p52, %s53, %s54
      %p58 = pneg %p52
      %p59 = scmp.eq.s32.totalorder %s17, 1
      %p60 = por %p58, %p59
      %p61 = scmp.ne.s32.totalorder %s53, %s56
      %p62 = scmp.eq.s32.totalorder %s17, 0
      %p63 = por %p61, %p62
      %p64 = scmp.ne.s32.totalorder %s53, %s56
      %p65 = scmp.eq.s32.totalorder %s22, 1
      %p66 = por %p64, %p65
      %p67 = scmp.ne.s32.totalorder %s56, %s57
      %p68 = scmp.eq.s32.totalorder %s22, 0
      %p69 = por %p67, %p68
      %p70 = scmp.ne.s32.totalorder %s56, %s57
      %p71 = scmp.eq.s32.totalorder %s23, 1
      %p72 = por %p70, %p71
      %p74 = scmp.ne.s32.totalorder %s57, %s73
      %p75 = scmp.eq.s32.totalorder %s23, 0
      %p76 = por %p74, %p75
      %s77 = ssub.s32 %s17, %s24
      %p78 = scmp.eq.s32.totalorder %s77, 0
      %s80 = sadd.s32 %s79, 1
      %s81 = scalar_select %p78, %s79, %s80
      %p84 = pneg %p78
      %p85 = scmp.eq.s32.totalorder %s17, 1
      %p86 = por %p84, %p85
      %p87 = scmp.ne.s32.totalorder %s79, %s82
      %p88 = scmp.eq.s32.totalorder %s17, 0
      %p89 = por %p87, %p88
      %p90 = scmp.ne.s32.totalorder %s79, %s82
      %p91 = scmp.eq.s32.totalorder %s22, 1
      %p92 = por %p90, %p91
      %p93 = scmp.ne.s32.totalorder %s82, %s83
      %p94 = scmp.eq.s32.totalorder %s22, 0
      %p95 = por %p93, %p94
      %p96 = scmp.ne.s32.totalorder %s82, %s83
      %p97 = scmp.eq.s32.totalorder %s23, 1
      %p98 = por %p96, %p97
      %p100 = scmp.ne.s32.totalorder %s83, %s99
      %p101 = scmp.eq.s32.totalorder %s23, 0
      %p102 = por %p100, %p101
      %p103 = scmp.le.s32.totalorder 1, %s17
      %p104 = scmp.lt.s32.totalorder %s17, 3
      %p105 = pnand %p103, %p104
      %p106 = pneg %p105
      // Predicated region
      $region9: #{tpu_custom_call.1} parent=5 // pred_check
        _
      $region10: #{tpu_custom_call.1} parent=5 // pred_check_branch
        %108 = sbr.rel (%p105) target = $region12
      $region11: #{tpu_custom_call.1} parent=5 // pred_region
        %s109 = ssub.s32 %s17, 1
      $region12: #{tpu_custom_call.1} parent=5 // pred_fallthru
        _
      %p110 = scmp.lt.s32.totalorder %s17, 2
      // Predicated region
      $region13: #{tpu_custom_call.1} parent=5 // pred_check
        %p111 = pneg %p110
      $region14: #{tpu_custom_call.1} parent=5 // pred_check_branch
        %113 = sbr.rel (%p111) target = $region16
      $region15: #{tpu_custom_call.1} parent=5 // pred_region
        // Predicated region
        $region17: #{tpu_custom_call.1} parent=15 // pred_check
          %p114 = pneg %p37
        $region18: #{tpu_custom_call.1} parent=15 // pred_check_branch
          %116 = sbr.rel (%p114) target = $region20
        $region19: #{tpu_custom_call.1} parent=15 // pred_region
          %s117 = sand.u32 %s27, 1
          %s118 = scalar_lea.sflag [#allocation3], %s117
          %s119 = sand.u32 %s27, 1
          %s120 = smul.addr %s119, 64
          %s121 = scalar_lea.vmem [#allocation2], %s120
          %s122 = smul.u32 2, %s17
          %s123 = ssub.s32 3, %s122
          %p124 = scmp.lt.s32.totalorder %s123, 2
          %s125 = scalar_select %p124, %s123, 2
          %s126 = smul.u32 8, %s125
          %s127 = smul.u32 %s126, 4
          %s128 = ssub.s32 64, %s127
          %s129 = sshll.u32 %s128, 4
          %130 = vsyncadd %s118, %s129
          %p131 = scmp.ne.s32.totalorder 0, %s127
          %s132 = smul.addr %s122, 4
          %s133 = smul.addr %s132, 8
          %s134 = scalar_lea.hbm %s0, %s133
          %s135 = smul.u32 32, %s125
          %s136 = sshll.u32 %s134, 4
          %s137 = int_to_ptr.hbm [resolvable:$true] %s136
          %s138 = sshll.u32 %s121, 4
          %s139 = int_to_ptr.vmem [resolvable:$true] %s138
          %s140 = sshll.u32 %s135, 4
          %144 = dma.hbm_to_vmem [thread:$0]  (%p131), %s137, %s140, %s139, %s118, 512, 512, 32
        $region20: #{tpu_custom_call.1} parent=15 // pred_fallthru
          _
        // Predicated region
        $region21: #{tpu_custom_call.1} parent=15 // pred_check
          %p145 = pneg %p63
        $region22: #{tpu_custom_call.1} parent=15 // pred_check_branch
          %147 = sbr.rel (%p145) target = $region24
        $region23: #{tpu_custom_call.1} parent=15 // pred_region
          %s148 = sand.u32 %s53, 1
          %s149 = scalar_lea.sflag [#allocation6], %s148
          %s150 = sand.u32 %s53, 1
          %s151 = smul.addr %s150, 64
          %s152 = scalar_lea.vmem [#allocation5], %s151
          %s153 = smul.u32 2, %s17
          %s154 = ssub.s32 3, %s153
          %p155 = scmp.lt.s32.totalorder %s154, 2
          %s156 = scalar_select %p155, %s154, 2
          %s157 = smul.u32 8, %s156
          %s158 = smul.u32 %s157, 4
          %s159 = ssub.s32 64, %s158
          %s160 = sshll.u32 %s159, 4
          %161 = vsyncadd %s149, %s160
          %p162 = scmp.ne.s32.totalorder 0, %s158
          %s163 = smul.addr %s153, 4
          %s164 = smul.addr %s163, 8
          %s165 = scalar_lea.hbm %s1, %s164
          %s166 = smul.u32 32, %s156
          %s167 = sshll.u32 %s165, 4
          %s168 = int_to_ptr.hbm [resolvable:$true] %s167
          %s169 = sshll.u32 %s152, 4
          %s170 = int_to_ptr.vmem [resolvable:$true] %s169
          %s171 = sshll.u32 %s166, 4
          %175 = dma.hbm_to_vmem [thread:$0]  (%p162), %s168, %s171, %s170, %s149, 512, 512, 32
        $region24: #{tpu_custom_call.1} parent=15 // pred_fallthru
          _
      $region16: #{tpu_custom_call.1} parent=5 // pred_fallthru
        _
      %p176 = scmp.le.s32.totalorder 1, %s17
      %p177 = scmp.lt.s32.totalorder %s17, 3
      %p178 = pnand %p176, %p177
      %p179 = pneg %p178
      // Predicated region
      $region25: #{tpu_custom_call.1} parent=5 // pred_check
        _
      $region26: #{tpu_custom_call.1} parent=5 // pred_check_branch
        %181 = sbr.rel (%p178) target = $region28
      $region27: #{tpu_custom_call.1} parent=5 // pred_region
        %s182 = ssub.s32 %s17, 1
        %s183 = sand.u32 %s30, 1
        %s184 = scalar_lea.sflag [#allocation3], %s183
        %s185 = sand.u32 %s30, 1
        %s186 = smul.addr %s185, 64
        %s187 = scalar_lea.vmem [#allocation2], %s186
        // Predicated region
        $region29: #{tpu_custom_call.1} parent=27 // pred_check
          %p188 = pneg %p43
        $region30: #{tpu_custom_call.1} parent=27 // pred_check_branch
          %190 = sbr.rel (%p188) target = $region32
        $region31: #{tpu_custom_call.1} parent=27 // pred_region
          %192 = dma.done %s184, 1024
        $region32: #{tpu_custom_call.1} parent=27 // pred_fallthru
          _
        %s193 = sand.u32 %s56, 1
        %s194 = scalar_lea.sflag [#allocation6], %s193
        %s195 = sand.u32 %s56, 1
        %s196 = smul.addr %s195, 64
        %s197 = scalar_lea.vmem [#allocation5], %s196
        // Predicated region
        $region33: #{tpu_custom_call.1} parent=27 // pred_check
          %p198 = pneg %p69
        $region34: #{tpu_custom_call.1} parent=27 // pred_check_branch
          %200 = sbr.rel (%p198) target = $region36
        $region35: #{tpu_custom_call.1} parent=27 // pred_region
          %202 = dma.done %s194, 1024
        $region36: #{tpu_custom_call.1} parent=27 // pred_fallthru
          _
        %s203 = sand.u32 %s30, 1
        %s204 = scalar_lea.sflag [#allocation3], %s203
        %s205 = sand.u32 %s30, 1
        %s206 = smul.addr %s205, 64
        %s207 = scalar_lea.vmem [#allocation2], %s206
        %p208 = pneg %p43
        %p209 = pneg %p40
        %s210 = sand.u32 %s56, 1
        %s211 = scalar_lea.sflag [#allocation6], %s210
        %s212 = sand.u32 %s56, 1
        %s213 = smul.addr %s212, 64
        %s214 = scalar_lea.vmem [#allocation5], %s213
        %p215 = pneg %p69
        %p216 = pneg %p66
        %p217 = pneg %p95
        %p218 = pneg %p92
        %s219 = sand.u32 %s82, 1
        %s220 = scalar_lea.sflag [#allocation4], %s219
        %s221 = sand.u32 %s82, 1
        %s222 = smul.addr %s221, 8
        %s223 = scalar_lea.vmem [#allocation7], %s222
        %s224 = smul.u32 2, %s22
        %s225 = ssub.s32 3, %s224
        %p226 = scmp.lt.s32.totalorder %s225, 2
        %s227 = scalar_select %p226, %s225, 2
        %s228 = smul.u32 8, %s227
        %s229 = smul.u32 %s228, 4
        %s230 = smul.u32 2, %s22
        %s231 = ssub.s32 3, %s230
        %p232 = scmp.lt.s32.totalorder %s231, 2
        %s233 = scalar_select %p232, %s231, 2
        %s234 = smul.u32 8, %s233
        %s235 = smul.u32 %s234, 4
        %v236 = vld [vmem:[%s187] sm:$0xff]
        %v237 = vld [vmem:[%s187 + $0x8] sm:$0xff]
        %v238 = vld [vmem:[%s187 + $0x10] sm:$0xff]
        %v239 = vld [vmem:[%s187 + $0x18] sm:$0xff]
        %v240 = vld [vmem:[%s187 + $0x20] sm:$0xff]
        %v241 = vld [vmem:[%s187 + $0x28] sm:$0xff]
        %v242 = vld [vmem:[%s187 + $0x30] sm:$0xff]
        %v243 = vld [vmem:[%s187 + $0x38] sm:$0xff]
        %v244 = vld [vmem:[%s197] sm:$0xff]
        %v245 = vld [vmem:[%s197 + $0x8] sm:$0xff]
        %v246 = vld [vmem:[%s197 + $0x10] sm:$0xff]
        %v247 = vld [vmem:[%s197 + $0x18] sm:$0xff]
        %v248 = vld [vmem:[%s197 + $0x20] sm:$0xff]
        %v249 = vld [vmem:[%s197 + $0x28] sm:$0xff]
        %v250 = vld [vmem:[%s197 + $0x30] sm:$0xff]
        %v251 = vld [vmem:[%s197 + $0x38] sm:$0xff]
        %252 = vrot.lane.b32.xlu0 %v236, 50
        %v253 = vpop.permute.xlu0 %252
        %254 = vrot.lane.b32.xlu0 %v240, 50
        %v255 = vpop.permute.xlu0 %254
        %256 = vrot.lane.b32.xlu0 %v237, 50
        %v257 = vpop.permute.xlu0 %256
        %258 = vrot.lane.b32.xlu0 %v241, 50
        %v259 = vpop.permute.xlu0 %258
        %260 = vrot.lane.b32.xlu0 %v238, 50
        %v261 = vpop.permute.xlu0 %260
        %262 = vrot.lane.b32.xlu0 %v242, 50
        %v263 = vpop.permute.xlu0 %262
        %264 = vrot.lane.b32.xlu0 %v239, 50
        %v265 = vpop.permute.xlu0 %264
        %266 = vrot.lane.b32.xlu0 %v243, 50
        %v267 = vpop.permute.xlu0 %266
        %v268 = vlaneseq
        %v269 = vand.u32 %v268, 127
        %vm270 = vcmp.lt.s32.totalorder %v269, 50
        %v271 = vsel %vm270, %v261, %v265
        %v272 = vsel %vm270, %v263, %v267
        %v273 = vsel %vm270, %v257, %v261
        %v274 = vsel %vm270, %v259, %v263
        %v275 = vsel %vm270, %v253, %v257
        %v276 = vsel %vm270, %v255, %v259
        %v277 = vsel %vm270, %v265, %v253
        %v278 = vsel %vm270, %v267, %v255
        %v279 = vsub.f32 %v236, %v277
        %v280 = vsub.f32 %v237, %v275
        %v281 = vsub.f32 %v238, %v273
        %v282 = vsub.f32 %v239, %v271
        %v283 = vsub.f32 %v240, %v278
        %v284 = vsub.f32 %v241, %v276
        %v285 = vsub.f32 %v242, %v274
        %v286 = vsub.f32 %v243, %v272
        %287 = vrot.lane.b32.xlu0 %v244, 50
        %v288 = vpop.permute.xlu0 %287
        %289 = vrot.lane.b32.xlu0 %v248, 50
        %v290 = vpop.permute.xlu0 %289
        %291 = vrot.lane.b32.xlu0 %v245, 50
        %v292 = vpop.permute.xlu0 %291
        %293 = vrot.lane.b32.xlu0 %v249, 50
        %v294 = vpop.permute.xlu0 %293
        %295 = vrot.lane.b32.xlu0 %v246, 50
        %v296 = vpop.permute.xlu0 %295
        %297 = vrot.lane.b32.xlu0 %v250, 50
        %v298 = vpop.permute.xlu0 %297
        %299 = vrot.lane.b32.xlu0 %v247, 50
        %v300 = vpop.permute.xlu0 %299
        %301 = vrot.lane.b32.xlu0 %v251, 50
        %v302 = vpop.permute.xlu0 %301
        %v303 = vsel %vm270, %v296, %v300
        %v304 = vsel %vm270, %v298, %v302
        %v305 = vsel %vm270, %v292, %v296
        %v306 = vsel %vm270, %v294, %v298
        %v307 = vsel %vm270, %v288, %v292
        %v308 = vsel %vm270, %v290, %v294
        %v309 = vsel %vm270, %v300, %v288
        %v310 = vsel %vm270, %v302, %v290
        %v311 = vsub.f32 %v244, %v309
        %v312 = vsub.f32 %v245, %v307
        %v313 = vsub.f32 %v246, %v305
        %v314 = vsub.f32 %v247, %v303
        %v315 = vsub.f32 %v248, %v310
        %v316 = vsub.f32 %v249, %v308
        %v317 = vsub.f32 %v250, %v306
        %v318 = vsub.f32 %v251, %v304
        %v319 = vsub.f32 %v279, %v311
        %v320 = vsub.f32 %v280, %v312
        %v321 = vsub.f32 %v281, %v313
        %v322 = vsub.f32 %v282, %v314
        %v323 = vsub.f32 %v283, %v315
        %v324 = vsub.f32 %v284, %v316
        %v325 = vsub.f32 %v285, %v317
        %v326 = vsub.f32 %v286, %v318
        %v327 = vand.u32 2147483647, %v279
        %v328 = vand.u32 2147483647, %v280
        %v329 = vand.u32 2147483647, %v281
        %v330 = vand.u32 2147483647, %v282
        %v331 = vand.u32 2147483647, %v283
        %v332 = vand.u32 2147483647, %v284
        %v333 = vand.u32 2147483647, %v285
        %v334 = vand.u32 2147483647, %v286
        %v335 = vmul.f32 %v319, %v319
        %v336 = vmul.f32 %v320, %v320
        %v337 = vmul.f32 %v321, %v321
        %v338 = vmul.f32 %v322, %v322
        %v339 = vmul.f32 %v323, %v323
        %v340 = vmul.f32 %v324, %v324
        %v341 = vmul.f32 %v325, %v325
        %v342 = vmul.f32 %v326, %v326
        %v343 = vlaneseq
        %v344 = vshrl.u32 %v343, 7
        %v345 = vadd.s32 %v344, 8
        %s346 = smul.u32 %s22, 16
        %v347 = vstv %s346
        %v348 = vadd.s32 %v344, %v347
        %v349 = vadd.s32 %v345, %v347
        %vm350 = vcmp.lt.s32.totalorder %v348, 18
        %vm351 = vcmp.lt.s32.totalorder %v349, 18
        %v352 = vsel %vm350, 1, 0
        %v353 = vsel %vm351, 1, 0
        %vm354 = vcmp.eq.s32.totalorder %v352, 1
        %vm355 = vcmp.eq.s32.totalorder %v353, 1
        %v356 = vsel %vm354, %v327, 0.0
        %v357 = vsel %vm354, %v328, 0.0
        %v358 = vsel %vm354, %v329, 0.0
        %v359 = vsel %vm354, %v330, 0.0
        %v360 = vsel %vm355, %v331, 0.0
        %v361 = vsel %vm355, %v332, 0.0
        %v362 = vsel %vm355, %v333, 0.0
        %v363 = vsel %vm355, %v334, 0.0
        %v364 = vsel %vm354, %v335, 0.0
        %v365 = vsel %vm354, %v336, 0.0
        %v366 = vsel %vm354, %v337, 0.0
        %v367 = vsel %vm354, %v338, 0.0
        %v368 = vsel %vm355, %v339, 0.0
        %v369 = vsel %vm355, %v340, 0.0
        %v370 = vsel %vm355, %v341, 0.0
        %v371 = vsel %vm355, %v342, 0.0
        %v372 = vadd.f32 %v356, %v360
        %v373 = vrot.slane %v372, 4
        %v374 = vadd.f32 %v372, %v373
        %v375 = vrot.slane %v374, 2
        %v376 = vadd.f32 %v374, %v375
        %v377 = vrot.slane %v376, 1
        %v378 = vadd.f32 %v376, %v377
        %v379 = vadd.f32 %v357, %v361
        %v380 = vrot.slane %v379, 4
        %v381 = vadd.f32 %v379, %v380
        %v382 = vrot.slane %v381, 2
        %v383 = vadd.f32 %v381, %v382
        %v384 = vrot.slane %v383, 1
        %v385 = vadd.f32 %v383, %v384
        %v386 = vadd.f32 %v358, %v362
        %v387 = vrot.slane %v386, 4
        %v388 = vadd.f32 %v386, %v387
        %v389 = vrot.slane %v388, 2
        %v390 = vadd.f32 %v388, %v389
        %v391 = vrot.slane %v390, 1
        %v392 = vadd.f32 %v390, %v391
        %v393 = vadd.f32 %v359, %v363
        %v394 = vrot.slane %v393, 4
        %v395 = vadd.f32 %v393, %v394
        %v396 = vrot.slane %v395, 2
        %v397 = vadd.f32 %v395, %v396
        %v398 = vrot.slane %v397, 1
        %v399 = vadd.f32 %v397, %v398
        %v400 = vadd.f32 %v364, %v368
        %v401 = vrot.slane %v400, 4
        %v402 = vadd.f32 %v400, %v401
        %v403 = vrot.slane %v402, 2
        %v404 = vadd.f32 %v402, %v403
        %v405 = vrot.slane %v404, 1
        %v406 = vadd.f32 %v404, %v405
        %v407 = vadd.f32 %v365, %v369
        %v408 = vrot.slane %v407, 4
        %v409 = vadd.f32 %v407, %v408
        %v410 = vrot.slane %v409, 2
        %v411 = vadd.f32 %v409, %v410
        %v412 = vrot.slane %v411, 1
        %v413 = vadd.f32 %v411, %v412
        %v414 = vadd.f32 %v366, %v370
        %v415 = vrot.slane %v414, 4
        %v416 = vadd.f32 %v414, %v415
        %v417 = vrot.slane %v416, 2
        %v418 = vadd.f32 %v416, %v417
        %v419 = vrot.slane %v418, 1
        %v420 = vadd.f32 %v418, %v419
        %v421 = vadd.f32 %v367, %v371
        %v422 = vrot.slane %v421, 4
        %v423 = vadd.f32 %v421, %v422
        %v424 = vrot.slane %v423, 2
        %v425 = vadd.f32 %v423, %v424
        %v426 = vrot.slane %v425, 1
        %v427 = vadd.f32 %v425, %v426
        %vm428 = vcmask 1040384
        %v429 = vsel %vm428, %v378, %v406
        %v430 = vsel %vm428, %v385, %v413
        %v431 = vsel %vm428, %v392, %v420
        %v432 = vsel %vm428, %v399, %v427
        %v437 = vrot.slane %v430, 6
        %v438 = vrot.slane %v431, 4
        %v439 = vrot.slane %v432, 2
        %vm440 = vcmask 1041408
        %v441 = vsel %vm440, %v429, %v437
        %vm442 = vcmask 1045508
        %v443 = vsel %vm442, %v438, %v439
        %vm444 = vcmask 1043456
        %v445 = vsel %vm444, %v441, %v443
        %447 = vst [vmem:[%s223] sm:$0xff] %v445
        %s448 = sand.u32 %s82, 1
        %s449 = scalar_lea.sflag [#allocation4], %s448
        %s450 = sand.u32 %s82, 1
        %s451 = smul.addr %s450, 8
        %s452 = scalar_lea.vmem [#allocation7], %s451
        // Predicated region
        $region37: #{tpu_custom_call.1} parent=27 // pred_check
          %p453 = pneg %p92
        $region38: #{tpu_custom_call.1} parent=27 // pred_check_branch
          %455 = sbr.rel (%p453) target = $region40
        $region39: #{tpu_custom_call.1} parent=27 // pred_region
          %457 = vsyncadd %s449, 0
          %s458 = smul.addr %s22, 4
          %s459 = smul.addr %s458, 2
          %s460 = scalar_lea.hbm %s2, %s459
          %s462 = sshll.u32 %s452, 4
          %s463 = int_to_ptr.vmem [resolvable:$true] %s462
          %s464 = sshll.u32 %s460, 4
          %s465 = int_to_ptr.hbm [resolvable:$true] %s464
          %467 = dma.vmem_to_hbm [thread:$0]  %s463, 128, %s465, %s449
        $region40: #{tpu_custom_call.1} parent=27 // pred_fallthru
          _
      $region28: #{tpu_custom_call.1} parent=5 // pred_fallthru
        _
      %p468 = scmp.le.s32.totalorder 2, %s17
      // Predicated region
      $region41: #{tpu_custom_call.1} parent=5 // pred_check
        %p469 = pneg %p468
      $region42: #{tpu_custom_call.1} parent=5 // pred_check_branch
        %471 = sbr.rel (%p469) target = $region44
      $region43: #{tpu_custom_call.1} parent=5 // pred_region
        %s472 = ssub.s32 %s17, 2
        // Predicated region
        $region45: #{tpu_custom_call.1} parent=43 // pred_check
          %p473 = pneg %p98
        $region46: #{tpu_custom_call.1} parent=43 // pred_check_branch
          %475 = sbr.rel (%p473) target = $region48
        $region47: #{tpu_custom_call.1} parent=43 // pred_region
          %s476 = sand.u32 %s83, 1
          %s477 = scalar_lea.sflag [#allocation4], %s476
          %s478 = sand.u32 %s83, 1
          %s479 = smul.addr %s478, 8
          %s480 = scalar_lea.vmem [#allocation7], %s479
          %482 = dma.done %s477, 128
        $region48: #{tpu_custom_call.1} parent=43 // pred_fallthru
          _
      $region44: #{tpu_custom_call.1} parent=5 // pred_fallthru
        _
    $region6: #{tpu_custom_call.1} parent=1 // loop_footer
      %s21 = sadd.s32 1, %s17
    $region7: #{tpu_custom_call.1} parent=1 // loop_footer_branch
      %16 = sbr.rel target = $region3
    $region8: #{tpu_custom_call.1} parent=1 // loop_exit
      _
    %483 = vsyncpa [#allocation3], 1
    %s484 = scalar_lea.sflag [#allocation3], 1
    %485 = vsyncpa %s484, 1
    %486 = vsyncpa [#allocation6], 1
    %s487 = scalar_lea.sflag [#allocation6], 1
    %488 = vsyncpa %s487, 1
    %489 = vsyncpa [#allocation4], 1
    %s490 = scalar_lea.sflag [#allocation4], 1
    %491 = vsyncpa %s490, 1

// kernel: tpu_custom_call.1
$region0: #{tpu_custom_call.1}
  #allocation0 [shape = 'u32[]', space=smem, size = 0x4, offset = 0x4, fixed_abs, tag = 'smem constant byte address 0x4 - core index']
  #allocation1 [shape = 'u32[72,128]{1,0:T(1,128)}', space=vmem, size = 0x9000, scoped, tag = 'internal scratch']
  %s0 = inlined_call_operand.hbm [shape: f32[18,8,50], index: 0, kind: input, shape index: {}]
  %s1 = inlined_call_operand.hbm [shape: f32[18,8,50], index: 1, kind: input, shape index: {}]
  %s2 = inlined_call_operand.hbm [shape: f32[2,2,8,50], index: 2, kind: output, shape index: {}]
  %s3 = sld [smem:[#allocation0]]
  $region49: #{tpu_custom_call.1} parent=0
    _
  %s5 = ssub.s32 1, %s3
  %s6 = scalar_select 0, %s5, %s3
  $region1: #{tpu_custom_call.1} parent=0
    #allocation2 [shape = 'u8[131072]{0}', space=vmem, size = 0x20000, scoped, tag = 'input window, operand 0']
    #allocation3 [shape = 's32[2]{0}', space=sflag, size = 0x8, scoped, tag = 'scoped memory for tpu_custom_call.1']
    #allocation4 [shape = 's32[2]{0}', space=sflag, size = 0x8, scoped, tag = 'scoped memory for tpu_custom_call.1']
    #allocation5 [shape = 'u8[131072]{0}', space=vmem, size = 0x20000, scoped, tag = 'input window, operand 1']
    #allocation6 [shape = 's32[2]{0}', space=sflag, size = 0x8, scoped, tag = 'scoped memory for tpu_custom_call.1']
    #allocation7 [shape = 'u8[16384]{0}', space=vmem, size = 0x4000, scoped, tag = 'output window, operand 0']
    %7 = vsyncpa [#allocation3], 0
    %s8 = scalar_lea.sflag [#allocation3], 1
    %9 = vsyncpa %s8, 0
    %10 = vsyncpa [#allocation6], 0
    %s11 = scalar_lea.sflag [#allocation6], 1
    %12 = vsyncpa %s11, 0
    %13 = vsyncpa [#allocation4], 0
    %s14 = scalar_lea.sflag [#allocation4], 1
    %15 = vsyncpa %s14, 0
    loop: start=0, step=1, limit=4
    $region2: #{tpu_custom_call.1} parent=1 // loop_pre_header
      _
    $region3: #{tpu_custom_call.1} parent=1 // loop_header
      %s17 = sphi 0, %s21
      %p18 = scmp.ge.s32.totalorder %s17, 4
      %s27 = sphi 0, %s29
      %s30 = sphi 0, %s27
      %s31 = sphi 0, %s30
      %s47 = sphi 0, %s31
      %s53 = sphi 0, %s55
      %s56 = sphi 0, %s53
      %s57 = sphi 0, %s56
      %s73 = sphi 0, %s57
      %s79 = sphi 0, %s81
      %s82 = sphi 0, %s79
      %s83 = sphi 0, %s82
      %s99 = sphi 0, %s83
    $region4: #{tpu_custom_call.1} parent=1 // loop_header_branch
      %20 = sbr.rel (%p18) target = $region8
    $region5: #{tpu_custom_call.1} parent=1 // loop_body
      %s22 = ssub.s32 %s17, 1
      %s23 = ssub.s32 %s17, 2
      %s24 = sadd.s32 %s17, 1
      %s25 = ssub.s32 %s17, %s24
      %p26 = scmp.eq.s32.totalorder %s25, 0
      %s28 = sadd.s32 %s27, 1
      %s29 = scalar_select %p26, %s27, %s28
      %p32 = pneg %p26
      %p33 = scmp.eq.s32.totalorder %s17, 1
      %p34 = por %p32, %p33
      %p35 = scmp.ne.s32.totalorder %s27, %s30
      %p36 = scmp.eq.s32.totalorder %s17, 0
      %p37 = por %p35, %p36
      %p38 = scmp.ne.s32.totalorder %s27, %s30
      %p39 = scmp.eq.s32.totalorder %s22, 1
      %p40 = por %p38, %p39
      %p41 = scmp.ne.s32.totalorder %s30, %s31
      %p42 = scmp.eq.s32.totalorder %s22, 0
      %p43 = por %p41, %p42
      %p44 = scmp.ne.s32.totalorder %s30, %s31
      %p45 = scmp.eq.s32.totalorder %s23, 1
      %p46 = por %p44, %p45
      %p48 = scmp.ne.s32.totalorder %s31, %s47
      %p49 = scmp.eq.s32.totalorder %s23, 0
      %p50 = por %p48, %p49
      %s51 = ssub.s32 %s17, %s24
      %p52 = scmp.eq.s32.totalorder %s51, 0
      %s54 = sadd.s32 %s53, 1
      %s55 = scalar_select %p52, %s53, %s54
      %p58 = pneg %p52
      %p59 = scmp.eq.s32.totalorder %s17, 1
      %p60 = por %p58, %p59
      %p61 = scmp.ne.s32.totalorder %s53, %s56
      %p62 = scmp.eq.s32.totalorder %s17, 0
      %p63 = por %p61, %p62
      %p64 = scmp.ne.s32.totalorder %s53, %s56
      %p65 = scmp.eq.s32.totalorder %s22, 1
      %p66 = por %p64, %p65
      %p67 = scmp.ne.s32.totalorder %s56, %s57
      %p68 = scmp.eq.s32.totalorder %s22, 0
      %p69 = por %p67, %p68
      %p70 = scmp.ne.s32.totalorder %s56, %s57
      %p71 = scmp.eq.s32.totalorder %s23, 1
      %p72 = por %p70, %p71
      %p74 = scmp.ne.s32.totalorder %s57, %s73
      %p75 = scmp.eq.s32.totalorder %s23, 0
      %p76 = por %p74, %p75
      %s77 = ssub.s32 %s17, %s24
      %p78 = scmp.eq.s32.totalorder %s77, 0
      %s80 = sadd.s32 %s79, 1
      %s81 = scalar_select %p78, %s79, %s80
      %p84 = pneg %p78
      %p85 = scmp.eq.s32.totalorder %s17, 1
      %p86 = por %p84, %p85
      %p87 = scmp.ne.s32.totalorder %s79, %s82
      %p88 = scmp.eq.s32.totalorder %s17, 0
      %p89 = por %p87, %p88
      %p90 = scmp.ne.s32.totalorder %s79, %s82
      %p91 = scmp.eq.s32.totalorder %s22, 1
      %p92 = por %p90, %p91
      %p93 = scmp.ne.s32.totalorder %s82, %s83
      %p94 = scmp.eq.s32.totalorder %s22, 0
      %p95 = por %p93, %p94
      %p96 = scmp.ne.s32.totalorder %s82, %s83
      %p97 = scmp.eq.s32.totalorder %s23, 1
      %p98 = por %p96, %p97
      %p100 = scmp.ne.s32.totalorder %s83, %s99
      %p101 = scmp.eq.s32.totalorder %s23, 0
      %p102 = por %p100, %p101
      %p103 = scmp.le.s32.totalorder 1, %s17
      %p104 = scmp.lt.s32.totalorder %s17, 3
      %p105 = pnand %p103, %p104
      %p106 = pneg %p105
      // Predicated region
      $region9: #{tpu_custom_call.1} parent=5 // pred_check
        _
      $region10: #{tpu_custom_call.1} parent=5 // pred_check_branch
        %108 = sbr.rel (%p105) target = $region12
      $region11: #{tpu_custom_call.1} parent=5 // pred_region
        %s109 = ssub.s32 %s17, 1
      $region12: #{tpu_custom_call.1} parent=5 // pred_fallthru
        _
      %p110 = scmp.lt.s32.totalorder %s17, 2
      // Predicated region
      $region13: #{tpu_custom_call.1} parent=5 // pred_check
        %p111 = pneg %p110
      $region14: #{tpu_custom_call.1} parent=5 // pred_check_branch
        %113 = sbr.rel (%p111) target = $region16
      $region15: #{tpu_custom_call.1} parent=5 // pred_region
        // Predicated region
        $region17: #{tpu_custom_call.1} parent=15 // pred_check
          %p114 = pneg %p37
        $region18: #{tpu_custom_call.1} parent=15 // pred_check_branch
          %116 = sbr.rel (%p114) target = $region20
        $region19: #{tpu_custom_call.1} parent=15 // pred_region
          %s117 = sand.u32 %s27, 1
          %s118 = scalar_lea.sflag [#allocation3], %s117
          %s119 = sand.u32 %s27, 1
          %s120 = smul.addr %s119, 128
          %s121 = scalar_lea.vmem [#allocation2], %s120
          %s122 = smul.u32 16, %s17
          %s123 = ssub.s32 18, %s122
          %p124 = scmp.lt.s32.totalorder %s123, 16
          %s125 = scalar_select %p124, %s123, 16
          %s126 = smul.u32 8, %s125
          %s127 = ssub.s32 128, %s126
          %s128 = sshll.u32 %s127, 4
          %129 = vsyncadd %s118, %s128
          %p130 = scmp.ne.s32.totalorder 0, %s126
          %s131 = smul.addr %s122, 8
          %s132 = scalar_lea.hbm %s0, %s131
          %s133 = smul.u32 8, %s125
          %s134 = sshll.u32 %s132, 4
          %s135 = int_to_ptr.hbm [resolvable:$true] %s134
          %s136 = sshll.u32 %s121, 4
          %s137 = int_to_ptr.vmem [resolvable:$true] %s136
          %s138 = sshll.u32 %s133, 4
          %142 = dma.hbm_to_vmem [thread:$0]  (%p130), %s135, %s138, %s137, %s118, 128, 128, 8
        $region20: #{tpu_custom_call.1} parent=15 // pred_fallthru
          _
        // Predicated region
        $region21: #{tpu_custom_call.1} parent=15 // pred_check
          %p143 = pneg %p63
        $region22: #{tpu_custom_call.1} parent=15 // pred_check_branch
          %145 = sbr.rel (%p143) target = $region24
        $region23: #{tpu_custom_call.1} parent=15 // pred_region
          %s146 = sand.u32 %s53, 1
          %s147 = scalar_lea.sflag [#allocation6], %s146
          %s148 = sand.u32 %s53, 1
          %s149 = smul.addr %s148, 128
          %s150 = scalar_lea.vmem [#allocation5], %s149
          %s151 = smul.u32 16, %s17
          %s152 = ssub.s32 18, %s151
          %p153 = scmp.lt.s32.totalorder %s152, 16
          %s154 = scalar_select %p153, %s152, 16
          %s155 = smul.u32 8, %s154
          %s156 = ssub.s32 128, %s155
          %s157 = sshll.u32 %s156, 4
          %158 = vsyncadd %s147, %s157
          %p159 = scmp.ne.s32.totalorder 0, %s155
          %s160 = smul.addr %s151, 8
          %s161 = scalar_lea.hbm %s1, %s160
          %s162 = smul.u32 8, %s154
          %s163 = sshll.u32 %s161, 4
          %s164 = int_to_ptr.hbm [resolvable:$true] %s163
          %s165 = sshll.u32 %s150, 4
          %s166 = int_to_ptr.vmem [resolvable:$true] %s165
          %s167 = sshll.u32 %s162, 4
          %171 = dma.hbm_to_vmem [thread:$0]  (%p159), %s164, %s167, %s166, %s147, 128, 128, 8
        $region24: #{tpu_custom_call.1} parent=15 // pred_fallthru
          _
      $region16: #{tpu_custom_call.1} parent=5 // pred_fallthru
        _
      %p172 = scmp.le.s32.totalorder 1, %s17
      %p173 = scmp.lt.s32.totalorder %s17, 3
      %p174 = pnand %p172, %p173
      %p175 = pneg %p174
      // Predicated region
      $region25: #{tpu_custom_call.1} parent=5 // pred_check
        _
      $region26: #{tpu_custom_call.1} parent=5 // pred_check_branch
        %177 = sbr.rel (%p174) target = $region28
      $region27: #{tpu_custom_call.1} parent=5 // pred_region
        %s178 = ssub.s32 %s17, 1
        %s179 = sand.u32 %s30, 1
        %s180 = scalar_lea.sflag [#allocation3], %s179
        %s181 = sand.u32 %s30, 1
        %s182 = smul.addr %s181, 128
        %s183 = scalar_lea.vmem [#allocation2], %s182
        // Predicated region
        $region29: #{tpu_custom_call.1} parent=27 // pred_check
          %p184 = pneg %p43
        $region30: #{tpu_custom_call.1} parent=27 // pred_check_branch
          %186 = sbr.rel (%p184) target = $region32
        $region31: #{tpu_custom_call.1} parent=27 // pred_region
          %188 = dma.done %s180, 2048
        $region32: #{tpu_custom_call.1} parent=27 // pred_fallthru
          _
        %s189 = sand.u32 %s56, 1
        %s190 = scalar_lea.sflag [#allocation6], %s189
        %s191 = sand.u32 %s56, 1
        %s192 = smul.addr %s191, 128
        %s193 = scalar_lea.vmem [#allocation5], %s192
        // Predicated region
        $region33: #{tpu_custom_call.1} parent=27 // pred_check
          %p194 = pneg %p69
        $region34: #{tpu_custom_call.1} parent=27 // pred_check_branch
          %196 = sbr.rel (%p194) target = $region36
        $region35: #{tpu_custom_call.1} parent=27 // pred_region
          %198 = dma.done %s190, 2048
        $region36: #{tpu_custom_call.1} parent=27 // pred_fallthru
          _
        %s199 = sand.u32 %s30, 1
        %s200 = scalar_lea.sflag [#allocation3], %s199
        %s201 = sand.u32 %s30, 1
        %s202 = smul.addr %s201, 128
        %s203 = scalar_lea.vmem [#allocation2], %s202
        %p204 = pneg %p43
        %p205 = pneg %p40
        %s206 = sand.u32 %s56, 1
        %s207 = scalar_lea.sflag [#allocation6], %s206
        %s208 = sand.u32 %s56, 1
        %s209 = smul.addr %s208, 128
        %s210 = scalar_lea.vmem [#allocation5], %s209
        %p211 = pneg %p69
        %p212 = pneg %p66
        %p213 = pneg %p95
        %p214 = pneg %p92
        %s215 = sand.u32 %s82, 1
        %s216 = scalar_lea.sflag [#allocation4], %s215
        %s217 = sand.u32 %s82, 1
        %s218 = smul.addr %s217, 16
        %s219 = scalar_lea.vmem [#allocation7], %s218
        %s220 = smul.u32 16, %s22
        %s221 = ssub.s32 18, %s220
        %p222 = scmp.lt.s32.totalorder %s221, 16
        %s223 = scalar_select %p222, %s221, 16
        %s224 = smul.u32 8, %s223
        %s225 = smul.u32 16, %s22
        %s226 = ssub.s32 18, %s225
        %p227 = scmp.lt.s32.totalorder %s226, 16
        %s228 = scalar_select %p227, %s226, 16
        %s229 = smul.u32 8, %s228
        %v230 = vld [vmem:[%s183] sm:$0xff]
        %v231 = vld [vmem:[%s183 + $0x8] sm:$0xff]
        %v232 = vld [vmem:[%s183 + $0x10] sm:$0xff]
        %v233 = vld [vmem:[%s183 + $0x18] sm:$0xff]
        %v234 = vld [vmem:[%s183 + $0x20] sm:$0xff]
        %v235 = vld [vmem:[%s183 + $0x28] sm:$0xff]
        %v236 = vld [vmem:[%s183 + $0x30] sm:$0xff]
        %v237 = vld [vmem:[%s183 + $0x38] sm:$0xff]
        %v238 = vld [vmem:[%s183 + $0x40] sm:$0xff]
        %v239 = vld [vmem:[%s183 + $0x48] sm:$0xff]
        %v240 = vld [vmem:[%s183 + $0x50] sm:$0xff]
        %v241 = vld [vmem:[%s183 + $0x58] sm:$0xff]
        %v242 = vld [vmem:[%s183 + $0x60] sm:$0xff]
        %v243 = vld [vmem:[%s183 + $0x68] sm:$0xff]
        %v244 = vld [vmem:[%s183 + $0x70] sm:$0xff]
        %v245 = vld [vmem:[%s183 + $0x78] sm:$0xff]
        %v246 = vld [vmem:[%s193] sm:$0xff]
        %v247 = vld [vmem:[%s193 + $0x8] sm:$0xff]
        %v248 = vld [vmem:[%s193 + $0x10] sm:$0xff]
        %v249 = vld [vmem:[%s193 + $0x18] sm:$0xff]
        %v250 = vld [vmem:[%s193 + $0x20] sm:$0xff]
        %v251 = vld [vmem:[%s193 + $0x28] sm:$0xff]
        %v252 = vld [vmem:[%s193 + $0x30] sm:$0xff]
        %v253 = vld [vmem:[%s193 + $0x38] sm:$0xff]
        %v254 = vld [vmem:[%s193 + $0x40] sm:$0xff]
        %v255 = vld [vmem:[%s193 + $0x48] sm:$0xff]
        %v256 = vld [vmem:[%s193 + $0x50] sm:$0xff]
        %v257 = vld [vmem:[%s193 + $0x58] sm:$0xff]
        %v258 = vld [vmem:[%s193 + $0x60] sm:$0xff]
        %v259 = vld [vmem:[%s193 + $0x68] sm:$0xff]
        %v260 = vld [vmem:[%s193 + $0x70] sm:$0xff]
        %v261 = vld [vmem:[%s193 + $0x78] sm:$0xff]
        %v262 = vrot.slane %v230, 7
        %v263 = vrot.slane %v231, 7
        %v264 = vrot.slane %v232, 7
        %v265 = vrot.slane %v233, 7
        %v266 = vrot.slane %v234, 7
        %v267 = vrot.slane %v235, 7
        %v268 = vrot.slane %v236, 7
        %v269 = vrot.slane %v237, 7
        %v270 = vrot.slane %v238, 7
        %v271 = vrot.slane %v239, 7
        %v272 = vrot.slane %v240, 7
        %v273 = vrot.slane %v241, 7
        %v274 = vrot.slane %v242, 7
        %v275 = vrot.slane %v243, 7
        %v276 = vrot.slane %v244, 7
        %v277 = vrot.slane %v245, 7
        %v278 = vsub.f32 %v230, %v262
        %v279 = vsub.f32 %v231, %v263
        %v280 = vsub.f32 %v232, %v264
        %v281 = vsub.f32 %v233, %v265
        %v282 = vsub.f32 %v234, %v266
        %v283 = vsub.f32 %v235, %v267
        %v284 = vsub.f32 %v236, %v268
        %v285 = vsub.f32 %v237, %v269
        %v286 = vsub.f32 %v238, %v270
        %v287 = vsub.f32 %v239, %v271
        %v288 = vsub.f32 %v240, %v272
        %v289 = vsub.f32 %v241, %v273
        %v290 = vsub.f32 %v242, %v274
        %v291 = vsub.f32 %v243, %v275
        %v292 = vsub.f32 %v244, %v276
        %v293 = vsub.f32 %v245, %v277
        %v294 = vrot.slane %v246, 7
        %v295 = vrot.slane %v247, 7
        %v296 = vrot.slane %v248, 7
        %v297 = vrot.slane %v249, 7
        %v298 = vrot.slane %v250, 7
        %v299 = vrot.slane %v251, 7
        %v300 = vrot.slane %v252, 7
        %v301 = vrot.slane %v253, 7
        %v302 = vrot.slane %v254, 7
        %v303 = vrot.slane %v255, 7
        %v304 = vrot.slane %v256, 7
        %v305 = vrot.slane %v257, 7
        %v306 = vrot.slane %v258, 7
        %v307 = vrot.slane %v259, 7
        %v308 = vrot.slane %v260, 7
        %v309 = vrot.slane %v261, 7
        %v310 = vsub.f32 %v246, %v294
        %v311 = vsub.f32 %v247, %v295
        %v312 = vsub.f32 %v248, %v296
        %v313 = vsub.f32 %v249, %v297
        %v314 = vsub.f32 %v250, %v298
        %v315 = vsub.f32 %v251, %v299
        %v316 = vsub.f32 %v252, %v300
        %v317 = vsub.f32 %v253, %v301
        %v318 = vsub.f32 %v254, %v302
        %v319 = vsub.f32 %v255, %v303
        %v320 = vsub.f32 %v256, %v304
        %v321 = vsub.f32 %v257, %v305
        %v322 = vsub.f32 %v258, %v306
        %v323 = vsub.f32 %v259, %v307
        %v324 = vsub.f32 %v260, %v308
        %v325 = vsub.f32 %v261, %v309
        %v326 = vsub.f32 %v278, %v310
        %v327 = vsub.f32 %v279, %v311
        %v328 = vsub.f32 %v280, %v312
        %v329 = vsub.f32 %v281, %v313
        %v330 = vsub.f32 %v282, %v314
        %v331 = vsub.f32 %v283, %v315
        %v332 = vsub.f32 %v284, %v316
        %v333 = vsub.f32 %v285, %v317
        %v334 = vsub.f32 %v286, %v318
        %v335 = vsub.f32 %v287, %v319
        %v336 = vsub.f32 %v288, %v320
        %v337 = vsub.f32 %v289, %v321
        %v338 = vsub.f32 %v290, %v322
        %v339 = vsub.f32 %v291, %v323
        %v340 = vsub.f32 %v292, %v324
        %v341 = vsub.f32 %v293, %v325
        %v342 = vand.u32 2147483647, %v278
        %v343 = vand.u32 2147483647, %v279
        %v344 = vand.u32 2147483647, %v280
        %v345 = vand.u32 2147483647, %v281
        %v346 = vand.u32 2147483647, %v282
        %v347 = vand.u32 2147483647, %v283
        %v348 = vand.u32 2147483647, %v284
        %v349 = vand.u32 2147483647, %v285
        %v350 = vand.u32 2147483647, %v286
        %v351 = vand.u32 2147483647, %v287
        %v352 = vand.u32 2147483647, %v288
        %v353 = vand.u32 2147483647, %v289
        %v354 = vand.u32 2147483647, %v290
        %v355 = vand.u32 2147483647, %v291
        %v356 = vand.u32 2147483647, %v292
        %v357 = vand.u32 2147483647, %v293
        %v358 = vmul.f32 %v326, %v326
        %v359 = vmul.f32 %v327, %v327
        %v360 = vmul.f32 %v328, %v328
        %v361 = vmul.f32 %v329, %v329
        %v362 = vmul.f32 %v330, %v330
        %v363 = vmul.f32 %v331, %v331
        %v364 = vmul.f32 %v332, %v332
        %v365 = vmul.f32 %v333, %v333
        %v366 = vmul.f32 %v334, %v334
        %v367 = vmul.f32 %v335, %v335
        %v368 = vmul.f32 %v336, %v336
        %v369 = vmul.f32 %v337, %v337
        %v370 = vmul.f32 %v338, %v338
        %v371 = vmul.f32 %v339, %v339
        %v372 = vmul.f32 %v340, %v340
        %v373 = vmul.f32 %v341, %v341
        %s374 = smul.u32 %s22, 16
        %v375 = vstv %s374
        %v376 = vadd.s32 %v375, 1
        %v377 = vadd.s32 %v375, 2
        %v378 = vadd.s32 %v375, 3
        %v379 = vadd.s32 %v375, 4
        %v380 = vadd.s32 %v375, 5
        %v381 = vadd.s32 %v375, 6
        %v382 = vadd.s32 %v375, 7
        %v383 = vadd.s32 %v375, 8
        %v384 = vadd.s32 %v375, 9
        %v385 = vadd.s32 %v375, 10
        %v386 = vadd.s32 %v375, 11
        %v387 = vadd.s32 %v375, 12
        %v388 = vadd.s32 %v375, 13
        %v389 = vadd.s32 %v375, 14
        %v390 = vadd.s32 %v375, 15
        %vm391 = vcmp.lt.s32.totalorder %v375, 18
        %vm392 = vcmp.lt.s32.totalorder %v376, 18
        %vm393 = vcmp.lt.s32.totalorder %v377, 18
        %vm394 = vcmp.lt.s32.totalorder %v378, 18
        %vm395 = vcmp.lt.s32.totalorder %v379, 18
        %vm396 = vcmp.lt.s32.totalorder %v380, 18
        %vm397 = vcmp.lt.s32.totalorder %v381, 18
        %vm398 = vcmp.lt.s32.totalorder %v382, 18
        %vm399 = vcmp.lt.s32.totalorder %v383, 18
        %vm400 = vcmp.lt.s32.totalorder %v384, 18
        %vm401 = vcmp.lt.s32.totalorder %v385, 18
        %vm402 = vcmp.lt.s32.totalorder %v386, 18
        %vm403 = vcmp.lt.s32.totalorder %v387, 18
        %vm404 = vcmp.lt.s32.totalorder %v388, 18
        %vm405 = vcmp.lt.s32.totalorder %v389, 18
        %vm406 = vcmp.lt.s32.totalorder %v390, 18
        %v407 = vsel %vm391, 1, 0
        %v408 = vsel %vm392, 1, 0
        %v409 = vsel %vm393, 1, 0
        %v410 = vsel %vm394, 1, 0
        %v411 = vsel %vm395, 1, 0
        %v412 = vsel %vm396, 1, 0
        %v413 = vsel %vm397, 1, 0
        %v414 = vsel %vm398, 1, 0
        %v415 = vsel %vm399, 1, 0
        %v416 = vsel %vm400, 1, 0
        %v417 = vsel %vm401, 1, 0
        %v418 = vsel %vm402, 1, 0
        %v419 = vsel %vm403, 1, 0
        %v420 = vsel %vm404, 1, 0
        %v421 = vsel %vm405, 1, 0
        %v422 = vsel %vm406, 1, 0
        %vm423 = vcmp.eq.s32.totalorder %v407, 1
        %vm424 = vcmp.eq.s32.totalorder %v408, 1
        %vm425 = vcmp.eq.s32.totalorder %v409, 1
        %vm426 = vcmp.eq.s32.totalorder %v410, 1
        %vm427 = vcmp.eq.s32.totalorder %v411, 1
        %vm428 = vcmp.eq.s32.totalorder %v412, 1
        %vm429 = vcmp.eq.s32.totalorder %v413, 1
        %vm430 = vcmp.eq.s32.totalorder %v414, 1
        %vm431 = vcmp.eq.s32.totalorder %v415, 1
        %vm432 = vcmp.eq.s32.totalorder %v416, 1
        %vm433 = vcmp.eq.s32.totalorder %v417, 1
        %vm434 = vcmp.eq.s32.totalorder %v418, 1
        %vm435 = vcmp.eq.s32.totalorder %v419, 1
        %vm436 = vcmp.eq.s32.totalorder %v420, 1
        %vm437 = vcmp.eq.s32.totalorder %v421, 1
        %vm438 = vcmp.eq.s32.totalorder %v422, 1
        %v439 = vsel %vm423, %v342, 0.0
        %v440 = vsel %vm424, %v343, 0.0
        %v441 = vsel %vm425, %v344, 0.0
        %v442 = vsel %vm426, %v345, 0.0
        %v443 = vsel %vm427, %v346, 0.0
        %v444 = vsel %vm428, %v347, 0.0
        %v445 = vsel %vm429, %v348, 0.0
        %v446 = vsel %vm430, %v349, 0.0
        %v447 = vsel %vm431, %v350, 0.0
        %v448 = vsel %vm432, %v351, 0.0
        %v449 = vsel %vm433, %v352, 0.0
        %v450 = vsel %vm434, %v353, 0.0
        %v451 = vsel %vm435, %v354, 0.0
        %v452 = vsel %vm436, %v355, 0.0
        %v453 = vsel %vm437, %v356, 0.0
        %v454 = vsel %vm438, %v357, 0.0
        %v455 = vsel %vm423, %v358, 0.0
        %v456 = vsel %vm424, %v359, 0.0
        %v457 = vsel %vm425, %v360, 0.0
        %v458 = vsel %vm426, %v361, 0.0
        %v459 = vsel %vm427, %v362, 0.0
        %v460 = vsel %vm428, %v363, 0.0
        %v461 = vsel %vm429, %v364, 0.0
        %v462 = vsel %vm430, %v365, 0.0
        %v463 = vsel %vm431, %v366, 0.0
        %v464 = vsel %vm432, %v367, 0.0
        %v465 = vsel %vm433, %v368, 0.0
        %v466 = vsel %vm434, %v369, 0.0
        %v467 = vsel %vm435, %v370, 0.0
        %v468 = vsel %vm436, %v371, 0.0
        %v469 = vsel %vm437, %v372, 0.0
        %v470 = vsel %vm438, %v373, 0.0
        %vm471 = vcmask 408576
        %v472 = vsel %vm471, %v439, 0.0
        %v473 = vsel %vm471, %v440, 0.0
        %v474 = vadd.f32 %v472, %v473
        %v475 = vsel %vm471, %v441, 0.0
        %v476 = vadd.f32 %v474, %v475
        %v477 = vsel %vm471, %v442, 0.0
        %v478 = vadd.f32 %v476, %v477
        %v479 = vsel %vm471, %v443, 0.0
        %v480 = vadd.f32 %v478, %v479
        %v481 = vsel %vm471, %v444, 0.0
        %v482 = vadd.f32 %v480, %v481
        %v483 = vsel %vm471, %v445, 0.0
        %v484 = vadd.f32 %v482, %v483
        %v485 = vsel %vm471, %v446, 0.0
        %v486 = vadd.f32 %v484, %v485
        %v487 = vsel %vm471, %v447, 0.0
        %v488 = vadd.f32 %v486, %v487
        %v489 = vsel %vm471, %v448, 0.0
        %v490 = vadd.f32 %v488, %v489
        %v491 = vsel %vm471, %v449, 0.0
        %v492 = vadd.f32 %v490, %v491
        %v493 = vsel %vm471, %v450, 0.0
        %v494 = vadd.f32 %v492, %v493
        %v495 = vsel %vm471, %v451, 0.0
        %v496 = vadd.f32 %v494, %v495
        %v497 = vsel %vm471, %v452, 0.0
        %v498 = vadd.f32 %v496, %v497
        %v499 = vsel %vm471, %v453, 0.0
        %v500 = vadd.f32 %v498, %v499
        %v501 = vsel %vm471, %v454, 0.0
        %v502 = vadd.f32 %v500, %v501
        %v503 = vsel %vm471, %v455, 0.0
        %v504 = vsel %vm471, %v456, 0.0
        %v505 = vadd.f32 %v503, %v504
        %v506 = vsel %vm471, %v457, 0.0
        %v507 = vadd.f32 %v505, %v506
        %v508 = vsel %vm471, %v458, 0.0
        %v509 = vadd.f32 %v507, %v508
        %v510 = vsel %vm471, %v459, 0.0
        %v511 = vadd.f32 %v509, %v510
        %v512 = vsel %vm471, %v460, 0.0
        %v513 = vadd.f32 %v511, %v512
        %v514 = vsel %vm471, %v461, 0.0
        %v515 = vadd.f32 %v513, %v514
        %v516 = vsel %vm471, %v462, 0.0
        %v517 = vadd.f32 %v515, %v516
        %v518 = vsel %vm471, %v463, 0.0
        %v519 = vadd.f32 %v517, %v518
        %v520 = vsel %vm471, %v464, 0.0
        %v521 = vadd.f32 %v519, %v520
        %v522 = vsel %vm471, %v465, 0.0
        %v523 = vadd.f32 %v521, %v522
        %v524 = vsel %vm471, %v466, 0.0
        %v525 = vadd.f32 %v523, %v524
        %v526 = vsel %vm471, %v467, 0.0
        %v527 = vadd.f32 %v525, %v526
        %v528 = vsel %vm471, %v468, 0.0
        %v529 = vadd.f32 %v527, %v528
        %v530 = vsel %vm471, %v469, 0.0
        %v531 = vadd.f32 %v529, %v530
        %v532 = vsel %vm471, %v470, 0.0
        %v533 = vadd.f32 %v531, %v532
        %534 = vst.msk [vmem:[%s219] sm:$0xff] %vm471, %v502
        %535 = vst.msk [vmem:[%s219 + $0x8] sm:$0xff] %vm471, %v533
        %s536 = sand.u32 %s82, 1
        %s537 = scalar_lea.sflag [#allocation4], %s536
        %s538 = sand.u32 %s82, 1
        %s539 = smul.addr %s538, 16
        %s540 = scalar_lea.vmem [#allocation7], %s539
        // Predicated region
        $region37: #{tpu_custom_call.1} parent=27 // pred_check
          %p541 = pneg %p92
        $region38: #{tpu_custom_call.1} parent=27 // pred_check_branch
          %543 = sbr.rel (%p541) target = $region40
        $region39: #{tpu_custom_call.1} parent=27 // pred_region
          %545 = vsyncadd %s537, 0
          %s546 = smul.addr %s22, 2
          %s547 = smul.addr %s546, 8
          %s548 = scalar_lea.hbm %s2, %s547
          %s549 = sshll.u32 %s540, 4
          %s550 = int_to_ptr.vmem [resolvable:$true] %s549
          %s551 = sshll.u32 %s548, 4
          %s552 = int_to_ptr.hbm [resolvable:$true] %s551
          %557 = dma.vmem_to_hbm [thread:$0]  %s550, 256, %s552, %s537, 128, 128, 8
        $region40: #{tpu_custom_call.1} parent=27 // pred_fallthru
          _
      $region28: #{tpu_custom_call.1} parent=5 // pred_fallthru
        _
      %p558 = scmp.le.s32.totalorder 2, %s17
      // Predicated region
      $region41: #{tpu_custom_call.1} parent=5 // pred_check
        %p559 = pneg %p558
      $region42: #{tpu_custom_call.1} parent=5 // pred_check_branch
        %561 = sbr.rel (%p559) target = $region44
      $region43: #{tpu_custom_call.1} parent=5 // pred_region
        %s562 = ssub.s32 %s17, 2
        // Predicated region
        $region45: #{tpu_custom_call.1} parent=43 // pred_check
          %p563 = pneg %p98
        $region46: #{tpu_custom_call.1} parent=43 // pred_check_branch
          %565 = sbr.rel (%p563) target = $region48
        $region47: #{tpu_custom_call.1} parent=43 // pred_region
          %s566 = sand.u32 %s83, 1
          %s567 = scalar_lea.sflag [#allocation4], %s566
          %s568 = sand.u32 %s83, 1
          %s569 = smul.addr %s568, 16
          %s570 = scalar_lea.vmem [#allocation7], %s569
          %572 = dma.done %s567, 256
        $region48: #{tpu_custom_call.1} parent=43 // pred_fallthru
          _
      $region44: #{tpu_custom_call.1} parent=5 // pred_fallthru
        _
    $region6: #{tpu_custom_call.1} parent=1 // loop_footer
      %s21 = sadd.s32 1, %s17
    $region7: #{tpu_custom_call.1} parent=1 // loop_footer_branch
      %16 = sbr.rel target = $region3
    $region8: #{tpu_custom_call.1} parent=1 // loop_exit
      _
    %573 = vsyncpa [#allocation3], 1
    %s574 = scalar_lea.sflag [#allocation3], 1
    %575 = vsyncpa %s574, 1
    %576 = vsyncpa [#allocation6], 1
    %s577 = scalar_lea.sflag [#allocation6], 1
    %578 = vsyncpa %s577, 1
    %579 = vsyncpa [#allocation4], 1
    %s580 = scalar_lea.sflag [#allocation4], 1
    %581 = vsyncpa %s580, 1

</llo_original>
